<compile_context>
chip_gen: v7x
topology: tpu7x:2x2x1
jax: 0.10.0
libtpu: 0.0.40
codegen_flags: <defaults>
</compile_context>

<pallas_src>
import functools

import jax
import jax.numpy as jnp
from jax.experimental import pallas as pl
from jax.experimental.pallas import tpu as pltpu

_MIB = 1024 * 1024


# ----------------------------------------------------------------------------
# Plain-JAX grouping glue (FPS / ball query / gather).  Data-dependent sorts
# and gathers with no clean Pallas hot-path; kept outside the kernel.
# TODO(synk): the neighbor gather could be folded into the kernel with
# PrefetchScalarGridSpec row gathers instead of an XLA gather.
# ----------------------------------------------------------------------------
def square_distance(src, dst):
    # src: (B, N, C), dst: (B, M, C) -> (B, N, M)
    dist = -2.0 * jnp.einsum("bnc,bmc->bnm", src, dst)
    dist = dist + jnp.sum(src ** 2, -1)[:, :, None]
    dist = dist + jnp.sum(dst ** 2, -1)[:, None, :]
    return dist


def index_points(points, idx):
    # points: (B, N, C), idx: (B, ...) int -> (B, ..., C)
    return jax.vmap(lambda p, i: p[i])(points, idx)


def farthest_point_sample(xyz, npoint):
    # TODO(synk): torch uses randint for the FPS starting index; fixed start 0
    # per batch here for determinism.
    B, N, _ = xyz.shape
    centroids = jnp.zeros((B, npoint), dtype=jnp.int32)
    distance = jnp.full((B, N), 1e10, dtype=jnp.float32)
    farthest = jnp.zeros((B,), dtype=jnp.int32)

    def body(i, carry):
        centroids, distance, farthest = carry
        centroids = centroids.at[:, i].set(farthest)
        centroid = xyz[jnp.arange(B), farthest, :][:, None, :]
        dist = jnp.sum((xyz - centroid) ** 2, -1)
        distance = jnp.minimum(distance, dist)
        farthest = jnp.argmax(distance, axis=-1).astype(jnp.int32)
        return centroids, distance, farthest

    centroids, _, _ = jax.lax.fori_loop(0, npoint, body,
                                        (centroids, distance, farthest))
    return centroids


def query_ball_point(radius, nsample, xyz, new_xyz):
    B, N, _ = xyz.shape
    S = new_xyz.shape[1]
    group_idx = jnp.broadcast_to(jnp.arange(N, dtype=jnp.int32), (B, S, N))
    sqrdists = square_distance(new_xyz, xyz)
    group_idx = jnp.where(sqrdists > radius ** 2, N, group_idx)
    group_idx = jnp.sort(group_idx, axis=-1)[:, :, :nsample]
    group_first = group_idx[:, :, 0:1]
    group_idx = jnp.where(group_idx == N, group_first, group_idx)
    return group_idx


def sample_and_group_kmajor(npoint, radius, nsample, xyz, points):
    """Returns new_xyz (B,S,3) and grouped features in k-major layout (B,K,S,C).

    The k-major gather produces the kernel's HBM layout directly, so the large
    grouped tensor never goes through an extra HBM transpose.
    """
    new_xyz = index_points(xyz, farthest_point_sample(xyz, npoint))     # (B,S,3)
    idx = query_ball_point(radius, nsample, xyz, new_xyz)               # (B,S,K)
    idx_t = jnp.transpose(idx, (0, 2, 1))                               # (B,K,S) tiny
    grouped_xyz = index_points(xyz, idx_t) - new_xyz[:, None, :, :]     # (B,K,S,3)
    if points is not None:
        grouped_points = index_points(points, idx_t)                    # (B,K,S,D)
        new_points = jnp.concatenate([grouped_xyz, grouped_points], axis=-1)
    else:
        new_points = grouped_xyz
    return new_xyz, new_points                                          # (B,K,S,C)


# ----------------------------------------------------------------------------
# VMEM / tiling helpers
# ----------------------------------------------------------------------------
def _physical_vmem_bytes():
    try:
        info = pltpu.get_tpu_info()
        return int(getattr(info, "vmem_capacity_bytes", 128 * _MIB))
    except Exception:  # pragma: no cover - conservative fallback
        return 128 * _MIB


def _choose_tile(extent, footprint_fn, budget):
    cands = sorted({t for t in (2048, 1024, 512, 256, 128, 64, 32, 16, 8)
                    if t <= extent and extent % t == 0} | {extent}, reverse=True)
    for t in cands:
        if footprint_fn(t) <= budget:
            return t
    return cands[-1]


def _vmem_limit(footprint, phys):
    cap = int(0.7 * phys)                     # ~45 MiB on v7x, ~90 MiB on v5e/v6e
    want = int(1.5 * footprint) + 8 * _MIB    # headroom for compiler scratch
    return max(min(want, cap), min(32 * _MIB, cap))


def _param_bytes(layer_params):
    return sum(int(w.size) * 2 + int(b.size) * 4 for (w, b) in layer_params)


def _param_specs_and_flat(layer_params, n_grid_axes):
    if n_grid_axes == 2:
        zmap = lambda b, s: (0, 0)
    else:
        zmap = lambda b, p, n: (0, 0)
    flat, specs = [], []
    for (w, b) in layer_params:
        flat += [w, b]
        specs.append(pl.BlockSpec(w.shape, zmap))
        specs.append(pl.BlockSpec(b.shape, zmap))
    return flat, specs


# ----------------------------------------------------------------------------
# Pallas kernels
# ----------------------------------------------------------------------------
def _sa_mlp_kernel(x_ref, *rest, num_layers):
    """Grouped path.

    x_ref : (K, TS, C_in) bf16  -- K neighbor slabs for a tile of TS centroids.
    rest  : [w_0, b_0, ..., w_{L-1}, b_{L-1}, out_ref]
    out   : (TS, C_out) f32     -- max over K fused after the last layer.
    """
    out_ref = rest[-1]
    params = rest[:-1]
    K, TS, Cin = x_ref.shape

    # One long MXU stream per layer: (K*TS, C_in) x (C_in, C_out).
    h = x_ref[...].reshape(K * TS, Cin)
    for l in range(num_layers):
        w = params[2 * l][...]           # (C_in_l, C_out_l) bf16
        b = params[2 * l + 1][...]       # (1, C_out_l)  f32
        h = jnp.dot(h, w, preferred_element_type=jnp.float32)
        h = jnp.maximum(h + b, 0.0)      # bias + ReLU, once per layer
        if l < num_layers - 1:
            h = h.astype(jnp.bfloat16)   # bf16 back into the MXU

    cout = h.shape[-1]
    # Max over neighbors: K-1 elementwise VPU vmax ops over (TS, C_out) slabs.
    out_ref[...] = jnp.max(h.reshape(K, TS, cout), axis=0)


def _sa_mlp_group_all_kernel(x_ref, *rest, num_layers):
    """group_all path.

    x_ref : (TN, C_in) bf16 tile of the N points of one (batch, split).
    rest  : [w_0, b_0, ..., out_ref, max_scratch]
    out   : (1, C_out) f32 -- written once, at the last N tile.
    """
    out_ref, max_ref = rest[-2], rest[-1]
    params = rest[:-2]

    h = x_ref[...]
    for l in range(num_layers):
        w = params[2 * l][...]
        b = params[2 * l + 1][...]
        h = jnp.dot(h, w, preferred_element_type=jnp.float32)
        h = jnp.maximum(h + b, 0.0)
        if l < num_layers - 1:
            h = h.astype(jnp.bfloat16)

    n = pl.program_id(2)

    @pl.when(n == 0)
    def _():
        max_ref[...] = h                 # init with first tile (no -inf fill)

    @pl.when(n > 0)
    def _():
        max_ref[...] = jnp.maximum(max_ref[...], h)   # lane-wide VPU vmax

    @pl.when(n == pl.num_programs(2) - 1)
    def _():
        # Single cross-sublane reduction, once per (batch, split).
        out_ref[...] = jnp.max(max_ref[...], axis=0, keepdims=True)


# ----------------------------------------------------------------------------
# pallas_call wrappers
# ----------------------------------------------------------------------------
def sa_mlp_pallas(x_ksc, layer_params):
    """x_ksc: (B, K, S, C_in) bf16 -> (B, S, C_out) f32."""
    B, K, S, Cin = x_ksc.shape
    Cout = layer_params[-1][0].shape[1]
    cmax = max(int(w.shape[1]) for (w, _) in layer_params)
    pbytes = _param_bytes(layer_params)
    phys = _physical_vmem_bytes()
    budget = int(0.45 * phys)

    def footprint(ts):
        return (2 * K * ts * Cin * 2       # double-buffered bf16 input block
                + 2 * ts * Cout * 4        # double-buffered f32 output block
                + 2 * pbytes               # (double-buffered) weights / biases
                + 3 * K * ts * cmax * 4)   # live f32 intermediates

    TS = _choose_tile(S, footprint, budget)
    vmem_limit = _vmem_limit(footprint(TS), phys)

    flat_params, param_specs = _param_specs_and_flat(layer_params, n_grid_axes=2)
    in_specs = [pl.BlockSpec((None, K, TS, Cin),
                             lambda b, s: (b, 0, s, 0))] + param_specs
    out_specs = pl.BlockSpec((None, TS, Cout), lambda b, s: (b, s, 0))

    return pl.pallas_call(
        functools.partial(_sa_mlp_kernel, num_layers=len(layer_params)),
        out_shape=jax.ShapeDtypeStruct((B, S, Cout), jnp.float32),
        grid=(B, S // TS),
        in_specs=in_specs,
        out_specs=out_specs,
        compiler_params=pltpu.CompilerParams(
            dimension_semantics=("parallel", "parallel"),
            vmem_limit_bytes=vmem_limit),
    )(x_ksc, *flat_params)


def sa_mlp_group_all_pallas(x_nc, layer_params):
    """x_nc: (B, N, C_in) bf16 -> (B, 1, C_out) f32 (max over all N points)."""
    B, N, Cin = x_nc.shape
    Cout = layer_params[-1][0].shape[1]
    cmax = max(int(w.shape[1]) for (w, _) in layer_params)
    pbytes = _param_bytes(layer_params)
    phys = _physical_vmem_bytes()
    budget = int(0.45 * phys)

    def footprint(tn):
        return (2 * tn * Cin * 2 + 2 * Cout * 4 + 2 * pbytes
                + 3 * tn * cmax * 4 + tn * Cout * 4)   # + running-max scratch

    TN = _choose_tile(N, footprint, budget)
    n_tiles = N // TN
    # Split N 2-ways onto a parallel axis when possible so a v7x second
    # TensorCore has work even at B == 1.
    nsplit = 2 if (n_tiles >= 2 and n_tiles % 2 == 0) else 1
    tiles_per_split = n_tiles // nsplit
    vmem_limit = _vmem_limit(footprint(TN), phys)

    flat_params, param_specs = _param_specs_and_flat(layer_params, n_grid_axes=3)
    in_specs = [pl.BlockSpec(
        (None, TN, Cin),
        lambda b, p, n: (b, p * tiles_per_split + n, 0))] + param_specs
    out_specs = pl.BlockSpec((None, None, 1, Cout), lambda b, p, n: (b, p, 0, 0))

    partial_max = pl.pallas_call(
        functools.partial(_sa_mlp_group_all_kernel,
                          num_layers=len(layer_params)),
        out_shape=jax.ShapeDtypeStruct((B, nsplit, 1, Cout), jnp.float32),
        grid=(B, nsplit, tiles_per_split),
        in_specs=in_specs,
        out_specs=out_specs,
        scratch_shapes=[pltpu.VMEM((TN, Cout), jnp.float32)],
        compiler_params=pltpu.CompilerParams(
            dimension_semantics=("parallel", "parallel", "arbitrary"),
            vmem_limit_bytes=vmem_limit),
    )(x_nc, *flat_params)
    return jnp.max(partial_max, axis=1)               # (B, 1, C_out)


# ----------------------------------------------------------------------------
# PointNetSetAbstraction forward
# ----------------------------------------------------------------------------
class PointNetSetAbstraction:
    def __init__(self, npoint, radius, nsample, in_channel, mlp, group_all,
                 key=jax.random.PRNGKey(42)):
        self.npoint = npoint
        self.radius = radius
        self.nsample = nsample
        self.group_all = group_all
        # Per layer: (W^T[c_in, c_out] bf16 with the BN scale folded in,
        #             shift[1, c_out] f32).
        self.layer_params = []
        last = in_channel
        eps = 1e-5
        for out_channel in mlp:
            key, kw, kb, kg, kbeta = jax.random.split(key, 5)
            # Conv2d(last, out, 1): weight (out,last,1,1) -> (out,last); bias (out,)
            conv_w = jax.random.normal(kw, (out_channel, last), jnp.float32) * 0.1
            conv_b = jax.random.normal(kb, (out_channel,), jnp.float32) * 0.1
            # BatchNorm2d (inference): running_mean=0, running_var=1
            gamma = 1.0 + 0.1 * jax.random.normal(kg, (out_channel,), jnp.float32)
            beta = 0.1 * jax.random.normal(kbeta, (out_channel,), jnp.float32)
            running_mean = jnp.zeros((out_channel,), jnp.float32)
            running_var = jnp.ones((out_channel,), jnp.float32)
            scale = gamma / jnp.sqrt(running_var + eps)
            w_t = jnp.transpose(conv_w * scale[:, None]).astype(jnp.bfloat16)
            shift = (beta + (conv_b - running_mean) * scale).reshape(1, out_channel)
            self.layer_params.append((w_t, shift.astype(jnp.float32)))
            last = out_channel

    def __call__(self, xyz, points):
        # xyz: (B, 3, N), points: (B, D, N) or None
        B = xyz.shape[0]
        xyz_t = jnp.transpose(xyz, (0, 2, 1))                         # (B,N,3)
        points_t = None if points is None else jnp.transpose(points, (0, 2, 1))
        if self.group_all:
            new_xyz = jnp.zeros((B, 1, 3), dtype=xyz_t.dtype)
            if points_t is not None:
                x = jnp.concatenate([xyz_t, points_t], axis=-1)       # (B,N,C)
            else:
                x = xyz_t
            feat = sa_mlp_group_all_pallas(x.astype(jnp.bfloat16),
                                           self.layer_params)         # (B,1,Cout)
        else:
            new_xyz, new_points = sample_and_group_kmajor(
                self.npoint, self.radius, self.nsample, xyz_t, points_t)
            # new_points is already in the kernel's (B, K, S, C_in) layout.
            feat = sa_mlp_pallas(new_points.astype(jnp.bfloat16),
                                 self.layer_params)                   # (B,S,Cout)
        feat = jnp.transpose(feat, (0, 2, 1))                         # (B,Cout,S)
        new_xyz_out = jnp.transpose(new_xyz, (0, 2, 1))               # (B,3,S)
        return new_xyz_out, feat


if __name__ == "__main__":
    key = jax.random.PRNGKey(0)
    k_xyz, k_pts = jax.random.split(key)

    B, N, D = 2, 32, 4
    npoint, radius, nsample = 8, 0.4, 16
    mlp = [16, 32]
    in_channel = 3 + D

    xyz = jax.random.uniform(k_xyz, (B, 3, N), jnp.float32)       # (B, 3, N)
    points = jax.random.normal(k_pts, (B, D, N), jnp.float32)     # (B, D, N)

    # Grouped path
    sa = PointNetSetAbstraction(npoint, radius, nsample, in_channel, mlp,
                                group_all=False)
    new_xyz, new_points = sa(xyz, points)
    jax.block_until_ready((new_xyz, new_points))
    assert new_xyz.shape == (B, 3, npoint)
    assert new_points.shape == (B, mlp[-1], npoint)

    # group_all path
    sa_all = PointNetSetAbstraction(None, None, None, in_channel, mlp,
                                    group_all=True)
    new_xyz_a, new_points_a = sa_all(xyz, points)
    jax.block_until_ready((new_xyz_a, new_points_a))
    assert new_xyz_a.shape == (B, 3, 1)
    assert new_points_a.shape == (B, mlp[-1], 1)

    print("KERNEL_OK")
</pallas_src>

<mosaic_0001>
module attributes {stable_mosaic.version = 11 : i64} {
  func.func @_sa_mlp_kernel(%arg0: i32, %arg1: i32, %arg2: memref<1x16x8x7xbf16, #tpu.memory_space<vmem>>, %arg3: memref<7x16xbf16, #tpu.memory_space<vmem>>, %arg4: memref<1x16xf32, #tpu.memory_space<vmem>>, %arg5: memref<16x32xbf16, #tpu.memory_space<vmem>>, %arg6: memref<1x32xf32, #tpu.memory_space<vmem>>, %arg7: memref<1x8x32xf32, #tpu.memory_space<vmem>>) attributes {dimension_semantics = [#tpu.dimension_semantics<parallel>, #tpu.dimension_semantics<parallel>], iteration_bounds = array<i64: 2, 1>, scalar_prefetch = 0 : i64, scratch_operands = 0 : i64, tpu.core_type = #tpu.core_type<tc>, window_params = [{transform_indices = @transform_0, window_bounds = array<i64: 1, 16, 8, 7>}, {pipeline_mode = #tpu.pipeline_mode<synchronous>, transform_indices = @transform_1, window_bounds = array<i64: 7, 16>}, {pipeline_mode = #tpu.pipeline_mode<synchronous>, transform_indices = @transform_2, window_bounds = array<i64: 1, 16>}, {pipeline_mode = #tpu.pipeline_mode<synchronous>, transform_indices = @transform_3, window_bounds = array<i64: 16, 32>}, {pipeline_mode = #tpu.pipeline_mode<synchronous>, transform_indices = @transform_4, window_bounds = array<i64: 1, 32>}, {transform_indices = @transform_5, window_bounds = array<i64: 1, 8, 32>}]} {
    %c0 = arith.constant 0 : index
    %c0_0 = arith.constant 0 : index
    %c0_1 = arith.constant 0 : index
    %c0_2 = arith.constant 0 : index
    %0 = vector.load %arg2[%c0, %c0_0, %c0_1, %c0_2] : memref<1x16x8x7xbf16, #tpu.memory_space<vmem>>, vector<1x16x8x7xbf16>
    %1 = vector.shape_cast %0 : vector<1x16x8x7xbf16> to vector<16x8x7xbf16>
    %2 = vector.shape_cast %1 : vector<16x8x7xbf16> to vector<128x7xbf16>
    %c0_3 = arith.constant 0 : index
    %c0_4 = arith.constant 0 : index
    %3 = vector.load %arg3[%c0_3, %c0_4] : memref<7x16xbf16, #tpu.memory_space<vmem>>, vector<7x16xbf16>
    %c0_5 = arith.constant 0 : index
    %c0_6 = arith.constant 0 : index
    %4 = vector.load %arg4[%c0_5, %c0_6] : memref<1x16xf32, #tpu.memory_space<vmem>>, vector<1x16xf32>
    %cst = arith.constant dense<0.000000e+00> : vector<128x16xf32>
    %5 = tpu.matmul %2, %3, %cst {dimension_numbers = #tpu.dot_dimension_numbers<[1], [0], [0], [1], [0, 0, 1, 1], [], []>} : vector<128x7xbf16>, vector<7x16xbf16>, vector<128x16xf32> -> vector<128x16xf32>
    %6 = vector.broadcast %4 : vector<1x16xf32> to vector<128x16xf32>
    %7 = arith.addf %5, %6 : vector<128x16xf32>
    %cst_7 = arith.constant 0.000000e+00 : f32
    %8 = vector.broadcast %cst_7 : f32 to vector<128x16xf32>
    %9 = arith.maximumf %7, %8 : vector<128x16xf32>
    %10 = arith.truncf %9 : vector<128x16xf32> to vector<128x16xbf16>
    %c0_8 = arith.constant 0 : index
    %c0_9 = arith.constant 0 : index
    %11 = vector.load %arg5[%c0_8, %c0_9] : memref<16x32xbf16, #tpu.memory_space<vmem>>, vector<16x32xbf16>
    %c0_10 = arith.constant 0 : index
    %c0_11 = arith.constant 0 : index
    %12 = vector.load %arg6[%c0_10, %c0_11] : memref<1x32xf32, #tpu.memory_space<vmem>>, vector<1x32xf32>
    %cst_12 = arith.constant dense<0.000000e+00> : vector<128x32xf32>
    %13 = tpu.matmul %10, %11, %cst_12 {dimension_numbers = #tpu.dot_dimension_numbers<[1], [0], [0], [1], [0, 0, 1, 1], [], []>} : vector<128x16xbf16>, vector<16x32xbf16>, vector<128x32xf32> -> vector<128x32xf32>
    %14 = vector.broadcast %12 : vector<1x32xf32> to vector<128x32xf32>
    %15 = arith.addf %13, %14 : vector<128x32xf32>
    %cst_13 = arith.constant 0.000000e+00 : f32
    %16 = vector.broadcast %cst_13 : f32 to vector<128x32xf32>
    %17 = arith.maximumf %15, %16 : vector<128x32xf32>
    %18 = vector.shape_cast %17 : vector<128x32xf32> to vector<16x8x32xf32>
    %cst_14 = arith.constant dense<0xFF800000> : vector<8x32xf32>
    %19 = vector.multi_reduction <maximumf>, %18, %cst_14 [0] : vector<16x8x32xf32> to vector<8x32xf32>
    %c0_15 = arith.constant 0 : index
    %c0_16 = arith.constant 0 : index
    %c0_17 = arith.constant 0 : index
    %20 = vector.load %arg7[%c0_15, %c0_16, %c0_17] : memref<1x8x32xf32, #tpu.memory_space<vmem>>, vector<1x8x32xf32>
    %21 = vector.shape_cast %20 : vector<1x8x32xf32> to vector<8x32xf32>
    %22 = vector.shape_cast %19 : vector<8x32xf32> to vector<1x8x32xf32>
    tpu.vector_store %arg7[%c0_15, %c0_16, %c0_17], %22 {strides = array<i32>} : memref<1x8x32xf32, #tpu.memory_space<vmem>>, vector<1x8x32xf32>,
    return
  }
  func.func @transform_0(%arg0: i32, %arg1: i32) -> (i32, i32, i32, i32) {
    %c0_i32 = arith.constant 0 : i32
    %c0_i32_0 = arith.constant 0 : i32
    %c0_i32_1 = arith.constant 0 : i32
    return %arg0, %c0_i32, %arg1, %c0_i32_0 : i32, i32, i32, i32
  }
  func.func @transform_1(%arg0: i32, %arg1: i32) -> (i32, i32) {
    %c0_i32 = arith.constant 0 : i32
    %c0_i32_0 = arith.constant 0 : i32
    %c0_i32_1 = arith.constant 0 : i32
    return %c0_i32, %c0_i32_0 : i32, i32
  }
  func.func @transform_2(%arg0: i32, %arg1: i32) -> (i32, i32) {
    %c0_i32 = arith.constant 0 : i32
    %c0_i32_0 = arith.constant 0 : i32
    %c0_i32_1 = arith.constant 0 : i32
    return %c0_i32, %c0_i32_0 : i32, i32
  }
  func.func @transform_3(%arg0: i32, %arg1: i32) -> (i32, i32) {
    %c0_i32 = arith.constant 0 : i32
    %c0_i32_0 = arith.constant 0 : i32
    %c0_i32_1 = arith.constant 0 : i32
    return %c0_i32, %c0_i32_0 : i32, i32
  }
  func.func @transform_4(%arg0: i32, %arg1: i32) -> (i32, i32) {
    %c0_i32 = arith.constant 0 : i32
    %c0_i32_0 = arith.constant 0 : i32
    %c0_i32_1 = arith.constant 0 : i32
    return %c0_i32, %c0_i32_0 : i32, i32
  }
  func.func @transform_5(%arg0: i32, %arg1: i32) -> (i32, i32, i32) {
    %c0_i32 = arith.constant 0 : i32
    %c0_i32_0 = arith.constant 0 : i32
    return %arg0, %arg1, %c0_i32 : i32, i32, i32
  }
}

</mosaic_0001>

<llo_original>
// kernel: tpu_custom_call.1
$region0: #{tpu_custom_call.1}
  #allocation0 [shape = 'u32[]', space=smem, size = 0x4, offset = 0x4, fixed_abs, tag = 'smem constant byte address 0x4 - core index']
  #allocation1 [shape = 'u32[144,128]{1,0:T(1,128)}', space=vmem, size = 0x12000, scoped, tag = 'internal scratch']
  %s0 = inlined_call_operand.vmem [shape: bf16[2,16,8,7], index: 0, kind: input, shape index: {}]
  %s1 = inlined_call_operand.vmem [shape: bf16[7,16], index: 1, kind: input, shape index: {}]
  %s2 = inlined_call_operand.vmem [shape: f32[1,16], index: 2, kind: input, shape index: {}]
  %s3 = inlined_call_operand.vmem [shape: bf16[16,32], index: 3, kind: input, shape index: {}]
  %s4 = inlined_call_operand.vmem [shape: f32[1,32], index: 4, kind: input, shape index: {}]
  %s5 = inlined_call_operand.hbm [shape: f32[2,8,32], index: 5, kind: output, shape index: {}]
  %s6 = sld [smem:[#allocation0]]
  $region53: #{tpu_custom_call.1} parent=0
    _
  %s8 = ssub.s32 1, %s6
  %s9 = scalar_select 0, %s8, %s6
  $region1: #{tpu_custom_call.1} parent=0
    #allocation2 [shape = 'u8[8192]{0}', space=vmem, size = 0x2000, scoped, tag = 'output window, operand 0']
    #allocation3 [shape = 's32[2]{0}', space=sflag, size = 0x8, scoped, tag = 'scoped memory for tpu_custom_call.1']
    %10 = vsyncpa [#allocation3], 0
    %s11 = scalar_lea.sflag [#allocation3], 1
    %12 = vsyncpa %s11, 0
    loop: start=0, step=1, limit=4
    $region2: #{tpu_custom_call.1} parent=1 // loop_pre_header
      _
    $region3: #{tpu_custom_call.1} parent=1 // loop_header
      %s14 = sphi 0, %s18
      %p15 = scmp.ge.s32.totalorder %s14, 4
      %s21 = sphi 0, %s33
      %s22 = sphi 0, %s29
      %s23 = sphi 0, %s21
      %s24 = sphi 0, %s22
      %s25 = sphi 0, %s23
      %s26 = sphi 0, %s24
      %s38 = sphi 0, %s40
      %s41 = sphi 0, %s38
      %s42 = sphi 0, %s41
      %s58 = sphi 0, %s42
      %s62 = sphi 0, %s62
      %s64 = sphi 0, %s62
      %s65 = sphi 0, %s64
      %s79 = sphi 0, %s65
      %s83 = sphi 0, %s83
      %s85 = sphi 0, %s83
      %s86 = sphi 0, %s85
      %s100 = sphi 0, %s86
      %s104 = sphi 0, %s104
      %s106 = sphi 0, %s104
      %s107 = sphi 0, %s106
      %s121 = sphi 0, %s107
      %s125 = sphi 0, %s125
      %s127 = sphi 0, %s125
      %s128 = sphi 0, %s127
      %s142 = sphi 0, %s128
      %s150 = sphi 0, %s152
      %s153 = sphi 0, %s150
      %s154 = sphi 0, %s153
      %s170 = sphi 0, %s154
    $region4: #{tpu_custom_call.1} parent=1 // loop_header_branch
      %17 = sbr.rel (%p15) target = $region8
    $region5: #{tpu_custom_call.1} parent=1 // loop_body
      %s19 = ssub.s32 %s14, 1
      %s20 = ssub.s32 %s14, 2
      %s27 = sadd.s32 1, %s22
      %p28 = scmp.ge.s32.totalorder %s27, 1
      %s29 = scalar_select %p28, 0, %s27
      %s30 = sadd.s32 1, %s21
      %s31 = scalar_select %p28, %s30, %s21
      %p32 = scmp.ge.s32.totalorder %s31, 2
      %s33 = scalar_select %p32, 0, %s31
      %s34 = ssub.s32 %s21, %s33
      %s35 = ssub.s32 %s22, %s29
      %s36 = sor.u32 %s34, %s35
      %p37 = scmp.eq.s32.totalorder %s36, 0
      %s39 = sadd.s32 %s38, 1
      %s40 = scalar_select %p37, %s38, %s39
      %p43 = pneg %p37
      %p44 = scmp.eq.s32.totalorder %s14, 1
      %p45 = por %p43, %p44
      %p46 = scmp.ne.s32.totalorder %s38, %s41
      %p47 = scmp.eq.s32.totalorder %s14, 0
      %p48 = por %p46, %p47
      %p49 = scmp.ne.s32.totalorder %s38, %s41
      %p50 = scmp.eq.s32.totalorder %s19, 1
      %p51 = por %p49, %p50
      %p52 = scmp.ne.s32.totalorder %s41, %s42
      %p53 = scmp.eq.s32.totalorder %s19, 0
      %p54 = por %p52, %p53
      %p55 = scmp.ne.s32.totalorder %s41, %s42
      %p56 = scmp.eq.s32.totalorder %s20, 1
      %p57 = por %p55, %p56
      %p59 = scmp.ne.s32.totalorder %s42, %s58
      %p60 = scmp.eq.s32.totalorder %s20, 0
      %p61 = por %p59, %p60
      %s63 = sadd.s32 %s62, 1
      %p66 = scmp.eq.s32.totalorder %s14, 1
      %p67 = scmp.ne.s32.totalorder %s62, %s64
      %p68 = scmp.eq.s32.totalorder %s14, 0
      %p69 = por %p67, %p68
      %p70 = scmp.ne.s32.totalorder %s62, %s64
      %p71 = scmp.eq.s32.totalorder %s19, 1
      %p72 = por %p70, %p71
      %p73 = scmp.ne.s32.totalorder %s64, %s65
      %p74 = scmp.eq.s32.totalorder %s19, 0
      %p75 = por %p73, %p74
      %p76 = scmp.ne.s32.totalorder %s64, %s65
      %p77 = scmp.eq.s32.totalorder %s20, 1
      %p78 = por %p76, %p77
      %p80 = scmp.ne.s32.totalorder %s65, %s79
      %p81 = scmp.eq.s32.totalorder %s20, 0
      %p82 = por %p80, %p81
      %s84 = sadd.s32 %s83, 1
      %p87 = scmp.eq.s32.totalorder %s14, 1
      %p88 = scmp.ne.s32.totalorder %s83, %s85
      %p89 = scmp.eq.s32.totalorder %s14, 0
      %p90 = por %p88, %p89
      %p91 = scmp.ne.s32.totalorder %s83, %s85
      %p92 = scmp.eq.s32.totalorder %s19, 1
      %p93 = por %p91, %p92
      %p94 = scmp.ne.s32.totalorder %s85, %s86
      %p95 = scmp.eq.s32.totalorder %s19, 0
      %p96 = por %p94, %p95
      %p97 = scmp.ne.s32.totalorder %s85, %s86
      %p98 = scmp.eq.s32.totalorder %s20, 1
      %p99 = por %p97, %p98
      %p101 = scmp.ne.s32.totalorder %s86, %s100
      %p102 = scmp.eq.s32.totalorder %s20, 0
      %p103 = por %p101, %p102
      %s105 = sadd.s32 %s104, 1
      %p108 = scmp.eq.s32.totalorder %s14, 1
      %p109 = scmp.ne.s32.totalorder %s104, %s106
      %p110 = scmp.eq.s32.totalorder %s14, 0
      %p111 = por %p109, %p110
      %p112 = scmp.ne.s32.totalorder %s104, %s106
      %p113 = scmp.eq.s32.totalorder %s19, 1
      %p114 = por %p112, %p113
      %p115 = scmp.ne.s32.totalorder %s106, %s107
      %p116 = scmp.eq.s32.totalorder %s19, 0
      %p117 = por %p115, %p116
      %p118 = scmp.ne.s32.totalorder %s106, %s107
      %p119 = scmp.eq.s32.totalorder %s20, 1
      %p120 = por %p118, %p119
      %p122 = scmp.ne.s32.totalorder %s107, %s121
      %p123 = scmp.eq.s32.totalorder %s20, 0
      %p124 = por %p122, %p123
      %s126 = sadd.s32 %s125, 1
      %p129 = scmp.eq.s32.totalorder %s14, 1
      %p130 = scmp.ne.s32.totalorder %s125, %s127
      %p131 = scmp.eq.s32.totalorder %s14, 0
      %p132 = por %p130, %p131
      %p133 = scmp.ne.s32.totalorder %s125, %s127
      %p134 = scmp.eq.s32.totalorder %s19, 1
      %p135 = por %p133, %p134
      %p136 = scmp.ne.s32.totalorder %s127, %s128
      %p137 = scmp.eq.s32.totalorder %s19, 0
      %p138 = por %p136, %p137
      %p139 = scmp.ne.s32.totalorder %s127, %s128
      %p140 = scmp.eq.s32.totalorder %s20, 1
      %p141 = por %p139, %p140
      %p143 = scmp.ne.s32.totalorder %s128, %s142
      %p144 = scmp.eq.s32.totalorder %s20, 0
      %p145 = por %p143, %p144
      %s146 = ssub.s32 %s21, %s33
      %s147 = ssub.s32 %s22, %s29
      %s148 = sor.u32 %s146, %s147
      %p149 = scmp.eq.s32.totalorder %s148, 0
      %s151 = sadd.s32 %s150, 1
      %s152 = scalar_select %p149, %s150, %s151
      %p155 = pneg %p149
      %p156 = scmp.eq.s32.totalorder %s14, 1
      %p157 = por %p155, %p156
      %p158 = scmp.ne.s32.totalorder %s150, %s153
      %p159 = scmp.eq.s32.totalorder %s14, 0
      %p160 = por %p158, %p159
      %p161 = scmp.ne.s32.totalorder %s150, %s153
      %p162 = scmp.eq.s32.totalorder %s19, 1
      %p163 = por %p161, %p162
      %p164 = scmp.ne.s32.totalorder %s153, %s154
      %p165 = scmp.eq.s32.totalorder %s19, 0
      %p166 = por %p164, %p165
      %p167 = scmp.ne.s32.totalorder %s153, %s154
      %p168 = scmp.eq.s32.totalorder %s20, 1
      %p169 = por %p167, %p168
      %p171 = scmp.ne.s32.totalorder %s154, %s170
      %p172 = scmp.eq.s32.totalorder %s20, 0
      %p173 = por %p171, %p172
      %p174 = scmp.le.s32.totalorder 1, %s14
      %p175 = scmp.lt.s32.totalorder %s14, 3
      %p176 = pnand %p174, %p175
      %p177 = pneg %p176
      // Predicated region
      $region9: #{tpu_custom_call.1} parent=5 // pred_check
        _
      $region10: #{tpu_custom_call.1} parent=5 // pred_check_branch
        %179 = sbr.rel (%p176) target = $region12
      $region11: #{tpu_custom_call.1} parent=5 // pred_region
        %s180 = ssub.s32 %s14, 1
        // Predicated region
        $region13: #{tpu_custom_call.1} parent=11 // pred_check
          %p181 = pneg %p75
        $region14: #{tpu_custom_call.1} parent=11 // pred_check_branch
          %183 = sbr.rel (%p181) target = $region16
        $region15: #{tpu_custom_call.1} parent=11 // pred_region
          _
        $region16: #{tpu_custom_call.1} parent=11 // pred_fallthru
          _
        // Predicated region
        $region17: #{tpu_custom_call.1} parent=11 // pred_check
          %p184 = pneg %p96
        $region18: #{tpu_custom_call.1} parent=11 // pred_check_branch
          %186 = sbr.rel (%p184) target = $region20
        $region19: #{tpu_custom_call.1} parent=11 // pred_region
          _
        $region20: #{tpu_custom_call.1} parent=11 // pred_fallthru
          _
        // Predicated region
        $region21: #{tpu_custom_call.1} parent=11 // pred_check
          %p187 = pneg %p117
        $region22: #{tpu_custom_call.1} parent=11 // pred_check_branch
          %189 = sbr.rel (%p187) target = $region24
        $region23: #{tpu_custom_call.1} parent=11 // pred_region
          _
        $region24: #{tpu_custom_call.1} parent=11 // pred_fallthru
          _
        // Predicated region
        $region25: #{tpu_custom_call.1} parent=11 // pred_check
          %p190 = pneg %p138
        $region26: #{tpu_custom_call.1} parent=11 // pred_check_branch
          %192 = sbr.rel (%p190) target = $region28
        $region27: #{tpu_custom_call.1} parent=11 // pred_region
          _
        $region28: #{tpu_custom_call.1} parent=11 // pred_fallthru
          _
      $region12: #{tpu_custom_call.1} parent=5 // pred_fallthru
        _
      %p193 = scmp.lt.s32.totalorder %s14, 2
      // Predicated region
      $region29: #{tpu_custom_call.1} parent=5 // pred_check
        %p194 = pneg %p193
      $region30: #{tpu_custom_call.1} parent=5 // pred_check_branch
        %196 = sbr.rel (%p194) target = $region32
      $region31: #{tpu_custom_call.1} parent=5 // pred_region
        // Predicated region
        $region33: #{tpu_custom_call.1} parent=31 // pred_check
          %p197 = pneg %p48
        $region34: #{tpu_custom_call.1} parent=31 // pred_check_branch
          %199 = sbr.rel (%p197) target = $region36
        $region35: #{tpu_custom_call.1} parent=31 // pred_region
          %p200 = scmp.lt.s32.totalorder %s21, 1
          %s201 = scalar_select %p200, %s21, 1
          %p202 = scmp.lt.s32.totalorder %s22, 0
          %s203 = scalar_select %p202, %s22, 0
          %s204 = smul.addr %s201, 16
          %s205 = sadd.s32 %s203, %s204
          %s206 = smul.addr %s205, 4
          %s207 = scalar_lea.vmem %s0, %s206
        $region36: #{tpu_custom_call.1} parent=31 // pred_fallthru
          _
      $region32: #{tpu_custom_call.1} parent=5 // pred_fallthru
        _
      %p208 = scmp.le.s32.totalorder 1, %s14
      %p209 = scmp.lt.s32.totalorder %s14, 3
      %p210 = pnand %p208, %p209
      %p211 = pneg %p210
      // Predicated region
      $region37: #{tpu_custom_call.1} parent=5 // pred_check
        _
      $region38: #{tpu_custom_call.1} parent=5 // pred_check_branch
        %213 = sbr.rel (%p210) target = $region40
      $region39: #{tpu_custom_call.1} parent=5 // pred_region
        %s214 = ssub.s32 %s14, 1
        %p215 = scmp.lt.s32.totalorder %s23, 1
        %s216 = scalar_select %p215, %s23, 1
        %p217 = scmp.lt.s32.totalorder %s24, 0
        %s218 = scalar_select %p217, %s24, 0
        %s219 = smul.addr %s216, 16
        %s220 = sadd.s32 %s218, %s219
        %s221 = smul.addr %s220, 4
        %s222 = scalar_lea.vmem %s0, %s221
        %p223 = pneg %p54
        %p224 = pneg %p51
        %p225 = pneg %p75
        %p226 = pneg %p72
        %p227 = pneg %p96
        %p228 = pneg %p93
        %p229 = pneg %p117
        %p230 = pneg %p114
        %p231 = pneg %p138
        %p232 = pneg %p135
        %p233 = pneg %p166
        %p234 = pneg %p163
        %s235 = sand.u32 %s153, 1
        %s236 = scalar_lea.sflag [#allocation3], %s235
        %s237 = sand.u32 %s153, 1
        %s238 = smul.addr %s237, 8
        %s239 = scalar_lea.vmem [#allocation2], %s238
        %p240 = scmp.lt.s32.totalorder %s23, 1
        %s241 = scalar_select %p240, %s23, 1
        %p242 = scmp.lt.s32.totalorder %s24, 0
        %s243 = scalar_select %p242, %s24, 0
        %s244 = smul.addr %s241, 16
        %s245 = sadd.s32 %s243, %s244
        %s246 = smul.addr %s245, 4
        %s247 = scalar_lea.vmem %s0, %s246
        %v249 = vld [vmem:[%s247] sm:$0xf]
        %v250 = vld [vmem:[%s247 + $0x4] sm:$0xf]
        %v251 = vld [vmem:[%s247 + $0x8] sm:$0xf]
        %v252 = vld [vmem:[%s247 + $0xc] sm:$0xf]
        %v253 = vld [vmem:[%s247 + $0x10] sm:$0xf]
        %v254 = vld [vmem:[%s247 + $0x14] sm:$0xf]
        %v255 = vld [vmem:[%s247 + $0x18] sm:$0xf]
        %v256 = vld [vmem:[%s247 + $0x1c] sm:$0xf]
        %v257 = vld [vmem:[%s247 + $0x20] sm:$0xf]
        %v258 = vld [vmem:[%s247 + $0x24] sm:$0xf]
        %v259 = vld [vmem:[%s247 + $0x28] sm:$0xf]
        %v260 = vld [vmem:[%s247 + $0x2c] sm:$0xf]
        %v261 = vld [vmem:[%s247 + $0x30] sm:$0xf]
        %v262 = vld [vmem:[%s247 + $0x34] sm:$0xf]
        %v263 = vld [vmem:[%s247 + $0x38] sm:$0xf]
        %v264 = vld [vmem:[%s247 + $0x3c] sm:$0xf]
        %v265 = vld [vmem:[%s1] sm:$0xf]
        %v266 = vld [vmem:[%s2] sm:$0x1]
        %v268 = vlaneseq
        %v269 = vshrl.u32 %v268, 7
        %v270 = vsub.s32 0, %v269
        %v271 = vrot.slane %v266, %v270
        %v289 = vunpack.c.l.b16 %v249
        %v290 = vunpack.c.l.b16 %v250
        %v291 = vunpack.c.l.b16 %v251
        %v292 = vunpack.c.l.b16 %v252
        %v293 = vunpack.c.l.b16 %v253
        %v294 = vunpack.c.l.b16 %v254
        %v295 = vunpack.c.l.b16 %v255
        %v296 = vunpack.c.l.b16 %v256
        %v297 = vunpack.c.l.b16 %v257
        %v298 = vunpack.c.l.b16 %v258
        %v299 = vunpack.c.l.b16 %v259
        %v300 = vunpack.c.l.b16 %v260
        %v301 = vunpack.c.l.b16 %v261
        %v302 = vunpack.c.l.b16 %v262
        %v303 = vunpack.c.l.b16 %v263
        %v304 = vunpack.c.l.b16 %v264
        %v305 = vpack.c.b16 %v290, %v289
        %v306 = vpack.c.b16 %v292, %v291
        %v307 = vpack.c.b16 %v294, %v293
        %v308 = vpack.c.b16 %v296, %v295
        %v309 = vpack.c.b16 %v298, %v297
        %v310 = vpack.c.b16 %v300, %v299
        %v311 = vpack.c.b16 %v302, %v301
        %v312 = vpack.c.b16 %v304, %v303
        %vm313 = vcmask 56320
        %v315 = vsel %vm313, %v305, 0
        %v318 = vsel %vm313, %v306, 0
        %v321 = vsel %vm313, %v307, 0
        %v324 = vsel %vm313, %v308, 0
        %v327 = vsel %vm313, %v309, 0
        %v330 = vsel %vm313, %v310, 0
        %v333 = vsel %vm313, %v311, 0
        %v336 = vsel %vm313, %v312, 0
        %vm338 = vcmask 1042432
        %vm339 = vcmask 1043456
        %v340 = vsel %vm338, 4294967295, 65535
        %v341 = vsel %vm339, %v340, 0
        %v343 = vand.u32 %v265, %v341
        %345 = vmatprep.subr.bf16.mxu0 0
        %346 = vmatpush1.bf16.msra.mxu0 %v343
        %347 = vmatprep.subr.bf16.mxu0 0
        %348 = vmatpush1.bf16.msra.mxu0 0
        %349 = vmatprep.subr.bf16.mxu0 0
        %350 = vmatpush1.bf16.msra.mxu0 0
        %351 = vmatprep.subr.bf16.mxu0 0
        %352 = vmatpush1.bf16.msra.mxu0 0
        %353 = vmatprep.subr.bf16.mxu0 0
        %354 = vmatpush1.bf16.msra.mxu0 0
        %355 = vmatprep.subr.bf16.mxu0 0
        %356 = vmatpush1.bf16.msra.mxu0 0
        %357 = vmatprep.subr.bf16.mxu0 0
        %358 = vmatpush1.bf16.msra.mxu0 0
        %359 = vmatprep.subr.bf16.mxu0 0
        %360 = vmatpush1.bf16.msra.mxu0 0
        %361 = vmatprep.subr.bf16.mxu0 0
        %362 = vmatpush1.bf16.msra.mxu0 0
        %363 = vmatprep.subr.bf16.mxu0 0
        %364 = vmatpush1.bf16.msra.mxu0 0
        %365 = vmatprep.subr.bf16.mxu0 0
        %366 = vmatpush1.bf16.msra.mxu0 0
        %367 = vmatprep.subr.bf16.mxu0 0
        %368 = vmatpush1.bf16.msra.mxu0 0
        %369 = vmatprep.subr.bf16.mxu0 0
        %370 = vmatpush1.bf16.msra.mxu0 0
        %371 = vmatprep.subr.bf16.mxu0 0
        %372 = vmatpush1.bf16.msra.mxu0 0
        %373 = vmatprep.subr.bf16.mxu0 0
        %374 = vmatpush1.bf16.msra.mxu0 0
        %375 = vmatprep.subr.bf16.mxu0 0
        %376 = vmatpush1.bf16.msra.mxu0 0
        %377 = vmatprep.mubr.bf16.mxu0 0
        %378 = vmatmul.mubr.bf16.gmra.mrb[0].mxu0 %v315
        %v379 = vpop.f32.mrb[0].mxu0
        %v380 = vadd.f32 %v271, %v379
        %v381 = vpop.f32.mrb[0].mxu0
        %v382 = vpop.f32.mrb[0].mxu0
        %v383 = vadd.f32 %v271, %v382
        %v384 = vpop.f32.mrb[0].mxu0
        %385 = vmatprep.mubr.bf16.mxu0 0
        %386 = vmatmul.mubr.bf16.gmra.mrb[0].mxu0 %v318
        %v387 = vpop.f32.mrb[0].mxu0
        %v388 = vadd.f32 %v271, %v387
        %v389 = vpop.f32.mrb[0].mxu0
        %v390 = vpop.f32.mrb[0].mxu0
        %v391 = vadd.f32 %v271, %v390
        %v392 = vpop.f32.mrb[0].mxu0
        %393 = vmatprep.mubr.bf16.mxu0 0
        %394 = vmatmul.mubr.bf16.gmra.mrb[0].mxu0 %v321
        %v395 = vpop.f32.mrb[0].mxu0
        %v396 = vadd.f32 %v271, %v395
        %v397 = vpop.f32.mrb[0].mxu0
        %v398 = vpop.f32.mrb[0].mxu0
        %v399 = vadd.f32 %v271, %v398
        %v400 = vpop.f32.mrb[0].mxu0
        %401 = vmatprep.mubr.bf16.mxu0 0
        %402 = vmatmul.mubr.bf16.gmra.mrb[0].mxu0 %v324
        %v403 = vpop.f32.mrb[0].mxu0
        %v404 = vadd.f32 %v271, %v403
        %v405 = vpop.f32.mrb[0].mxu0
        %v406 = vpop.f32.mrb[0].mxu0
        %v407 = vadd.f32 %v271, %v406
        %v408 = vpop.f32.mrb[0].mxu0
        %409 = vmatprep.mubr.bf16.mxu0 0
        %410 = vmatmul.mubr.bf16.gmra.mrb[0].mxu0 %v327
        %v411 = vpop.f32.mrb[0].mxu0
        %v412 = vadd.f32 %v271, %v411
        %v413 = vpop.f32.mrb[0].mxu0
        %v414 = vpop.f32.mrb[0].mxu0
        %v415 = vadd.f32 %v271, %v414
        %v416 = vpop.f32.mrb[0].mxu0
        %417 = vmatprep.mubr.bf16.mxu0 0
        %418 = vmatmul.mubr.bf16.gmra.mrb[0].mxu0 %v330
        %v419 = vpop.f32.mrb[0].mxu0
        %v420 = vadd.f32 %v271, %v419
        %v421 = vpop.f32.mrb[0].mxu0
        %v422 = vpop.f32.mrb[0].mxu0
        %v423 = vadd.f32 %v271, %v422
        %v424 = vpop.f32.mrb[0].mxu0
        %425 = vmatprep.mubr.bf16.mxu0 0
        %426 = vmatmul.mubr.bf16.gmra.mrb[0].mxu0 %v333
        %v427 = vpop.f32.mrb[0].mxu0
        %v428 = vadd.f32 %v271, %v427
        %v429 = vpop.f32.mrb[0].mxu0
        %v430 = vpop.f32.mrb[0].mxu0
        %v431 = vadd.f32 %v271, %v430
        %v432 = vpop.f32.mrb[0].mxu0
        %433 = vmatprep.mubr.bf16.mxu0 0
        %434 = vmatmul.mubr.bf16.gmra.mrb[0].mxu0 %v336
        %v435 = vpop.f32.mrb[0].mxu0
        %v436 = vadd.f32 %v271, %v435
        %v437 = vpop.f32.mrb[0].mxu0
        %v438 = vpop.f32.mrb[0].mxu0
        %v439 = vadd.f32 %v271, %v438
        %v440 = vpop.f32.mrb[0].mxu0
        %441 = vdwg.mxu0
        %v442 = vmax.f32 %v380, 0.0
        %v443 = vmax.f32 %v383, 0.0
        %v444 = vmax.f32 %v388, 0.0
        %v445 = vmax.f32 %v391, 0.0
        %v446 = vmax.f32 %v396, 0.0
        %v447 = vmax.f32 %v399, 0.0
        %v448 = vmax.f32 %v404, 0.0
        %v449 = vmax.f32 %v407, 0.0
        %v450 = vmax.f32 %v412, 0.0
        %v451 = vmax.f32 %v415, 0.0
        %v452 = vmax.f32 %v420, 0.0
        %v453 = vmax.f32 %v423, 0.0
        %v454 = vmax.f32 %v428, 0.0
        %v455 = vmax.f32 %v431, 0.0
        %v456 = vmax.f32 %v436, 0.0
        %v457 = vmax.f32 %v439, 0.0
        %v458 = vpack.c.bf16 %v443, %v442
        %v459 = vpack.c.bf16 %v445, %v444
        %v460 = vpack.c.bf16 %v447, %v446
        %v461 = vpack.c.bf16 %v449, %v448
        %v462 = vpack.c.bf16 %v451, %v450
        %v463 = vpack.c.bf16 %v453, %v452
        %v464 = vpack.c.bf16 %v455, %v454
        %v465 = vpack.c.bf16 %v457, %v456
        %v466 = vld [vmem:[%s3] sm:$0xf]
        %v467 = vld [vmem:[%s3 + $0x4] sm:$0xf]
        %v468 = vld [vmem:[%s4] sm:$0x1]
        %v470 = vlaneseq
        %v471 = vshrl.u32 %v470, 7
        %v472 = vsub.s32 0, %v471
        %v473 = vrot.slane %v468, %v472
        %v477 = vunpack.c.l.b16 %v466
        %v478 = vunpack.c.l.b16 %v467
        %v479 = vpack.c.b16 %v478, %v477
        %vm481 = vcmask 130048
        %v483 = vsel %vm481, %v458, 0
        %v486 = vsel %vm481, %v459, 0
        %v489 = vsel %vm481, %v460, 0
        %v492 = vsel %vm481, %v461, 0
        %v495 = vsel %vm481, %v462, 0
        %v498 = vsel %vm481, %v463, 0
        %v501 = vsel %vm481, %v464, 0
        %v504 = vsel %vm481, %v465, 0
        %506 = vmatprep.subr.bf16.mxu0 0
        %507 = vmatpush1.bf16.msra.mxu0 %v479
        %508 = vmatprep.subr.bf16.mxu0 0
        %509 = vmatpush1.bf16.msra.mxu0 0
        %510 = vmatprep.subr.bf16.mxu0 0
        %511 = vmatpush1.bf16.msra.mxu0 0
        %512 = vmatprep.subr.bf16.mxu0 0
        %513 = vmatpush1.bf16.msra.mxu0 0
        %514 = vmatprep.subr.bf16.mxu0 0
        %515 = vmatpush1.bf16.msra.mxu0 0
        %516 = vmatprep.subr.bf16.mxu0 0
        %517 = vmatpush1.bf16.msra.mxu0 0
        %518 = vmatprep.subr.bf16.mxu0 0
        %519 = vmatpush1.bf16.msra.mxu0 0
        %520 = vmatprep.subr.bf16.mxu0 0
        %521 = vmatpush1.bf16.msra.mxu0 0
        %522 = vmatprep.subr.bf16.mxu0 0
        %523 = vmatpush1.bf16.msra.mxu0 0
        %524 = vmatprep.subr.bf16.mxu0 0
        %525 = vmatpush1.bf16.msra.mxu0 0
        %526 = vmatprep.subr.bf16.mxu0 0
        %527 = vmatpush1.bf16.msra.mxu0 0
        %528 = vmatprep.subr.bf16.mxu0 0
        %529 = vmatpush1.bf16.msra.mxu0 0
        %530 = vmatprep.subr.bf16.mxu0 0
        %531 = vmatpush1.bf16.msra.mxu0 0
        %532 = vmatprep.subr.bf16.mxu0 0
        %533 = vmatpush1.bf16.msra.mxu0 0
        %534 = vmatprep.subr.bf16.mxu0 0
        %535 = vmatpush1.bf16.msra.mxu0 0
        %536 = vmatprep.subr.bf16.mxu0 0
        %537 = vmatpush1.bf16.msra.mxu0 0
        %538 = vmatprep.mubr.bf16.mxu0 0
        %539 = vmatmul.mubr.bf16.gmra.mrb[0].mxu0 %v483
        %v540 = vpop.f32.mrb[0].mxu0
        %v541 = vadd.f32 %v473, %v540
        %v542 = vpop.f32.mrb[0].mxu0
        %v543 = vpop.f32.mrb[0].mxu0
        %v544 = vadd.f32 %v473, %v543
        %v545 = vpop.f32.mrb[0].mxu0
        %546 = vmatprep.mubr.bf16.mxu0 0
        %547 = vmatmul.mubr.bf16.gmra.mrb[0].mxu0 %v486
        %v548 = vpop.f32.mrb[0].mxu0
        %v549 = vadd.f32 %v473, %v548
        %v550 = vpop.f32.mrb[0].mxu0
        %v551 = vpop.f32.mrb[0].mxu0
        %v552 = vadd.f32 %v473, %v551
        %v553 = vpop.f32.mrb[0].mxu0
        %554 = vmatprep.mubr.bf16.mxu0 0
        %555 = vmatmul.mubr.bf16.gmra.mrb[0].mxu0 %v489
        %v556 = vpop.f32.mrb[0].mxu0
        %v557 = vadd.f32 %v473, %v556
        %v558 = vpop.f32.mrb[0].mxu0
        %v559 = vpop.f32.mrb[0].mxu0
        %v560 = vadd.f32 %v473, %v559
        %v561 = vpop.f32.mrb[0].mxu0
        %562 = vmatprep.mubr.bf16.mxu0 0
        %563 = vmatmul.mubr.bf16.gmra.mrb[0].mxu0 %v492
        %v564 = vpop.f32.mrb[0].mxu0
        %v565 = vadd.f32 %v473, %v564
        %v566 = vpop.f32.mrb[0].mxu0
        %v567 = vpop.f32.mrb[0].mxu0
        %v568 = vadd.f32 %v473, %v567
        %v569 = vpop.f32.mrb[0].mxu0
        %570 = vmatprep.mubr.bf16.mxu0 0
        %571 = vmatmul.mubr.bf16.gmra.mrb[0].mxu0 %v495
        %v572 = vpop.f32.mrb[0].mxu0
        %v573 = vadd.f32 %v473, %v572
        %v574 = vpop.f32.mrb[0].mxu0
        %v575 = vpop.f32.mrb[0].mxu0
        %v576 = vadd.f32 %v473, %v575
        %v577 = vpop.f32.mrb[0].mxu0
        %578 = vmatprep.mubr.bf16.mxu0 0
        %579 = vmatmul.mubr.bf16.gmra.mrb[0].mxu0 %v498
        %v580 = vpop.f32.mrb[0].mxu0
        %v581 = vadd.f32 %v473, %v580
        %v582 = vpop.f32.mrb[0].mxu0
        %v583 = vpop.f32.mrb[0].mxu0
        %v584 = vadd.f32 %v473, %v583
        %v585 = vpop.f32.mrb[0].mxu0
        %586 = vmatprep.mubr.bf16.mxu0 0
        %587 = vmatmul.mubr.bf16.gmra.mrb[0].mxu0 %v501
        %v588 = vpop.f32.mrb[0].mxu0
        %v589 = vadd.f32 %v473, %v588
        %v590 = vpop.f32.mrb[0].mxu0
        %v591 = vpop.f32.mrb[0].mxu0
        %v592 = vadd.f32 %v473, %v591
        %v593 = vpop.f32.mrb[0].mxu0
        %594 = vmatprep.mubr.bf16.mxu0 0
        %595 = vmatmul.mubr.bf16.gmra.mrb[0].mxu0 %v504
        %v596 = vpop.f32.mrb[0].mxu0
        %v597 = vadd.f32 %v473, %v596
        %v598 = vpop.f32.mrb[0].mxu0
        %v599 = vpop.f32.mrb[0].mxu0
        %v600 = vadd.f32 %v473, %v599
        %v601 = vpop.f32.mrb[0].mxu0
        %602 = vdwg.mxu0
        %v603 = vmax.f32 %v541, 0.0
        %v604 = vmax.f32 %v544, 0.0
        %v605 = vmax.f32 %v549, 0.0
        %v606 = vmax.f32 %v552, 0.0
        %v607 = vmax.f32 %v557, 0.0
        %v608 = vmax.f32 %v560, 0.0
        %v609 = vmax.f32 %v565, 0.0
        %v610 = vmax.f32 %v568, 0.0
        %v611 = vmax.f32 %v573, 0.0
        %v612 = vmax.f32 %v576, 0.0
        %v613 = vmax.f32 %v581, 0.0
        %v614 = vmax.f32 %v584, 0.0
        %v615 = vmax.f32 %v589, 0.0
        %v616 = vmax.f32 %v592, 0.0
        %v617 = vmax.f32 %v597, 0.0
        %v618 = vmax.f32 %v600, 0.0
        %vm619 = vcmask 261120
        %v620 = vsel %vm619, %v603, -inf
        %v621 = vsel %vm619, %v604, -inf
        %v622 = vsel %vm619, %v605, -inf
        %v623 = vsel %vm619, %v606, -inf
        %v624 = vsel %vm619, %v607, -inf
        %v625 = vmax.f32 %v620, %v624
        %v626 = vsel %vm619, %v608, -inf
        %v627 = vmax.f32 %v621, %v626
        %v628 = vsel %vm619, %v609, -inf
        %v629 = vmax.f32 %v622, %v628
        %v630 = vsel %vm619, %v610, -inf
        %v631 = vmax.f32 %v623, %v630
        %v632 = vsel %vm619, %v611, -inf
        %v633 = vmax.f32 %v625, %v632
        %v634 = vsel %vm619, %v612, -inf
        %v635 = vmax.f32 %v627, %v634
        %v636 = vsel %vm619, %v613, -inf
        %v637 = vmax.f32 %v629, %v636
        %v638 = vsel %vm619, %v614, -inf
        %v639 = vmax.f32 %v631, %v638
        %v640 = vsel %vm619, %v615, -inf
        %v641 = vmax.f32 %v633, %v640
        %v642 = vsel %vm619, %v616, -inf
        %v643 = vmax.f32 %v635, %v642
        %v644 = vsel %vm619, %v617, -inf
        %v645 = vmax.f32 %v637, %v644
        %v646 = vsel %vm619, %v618, -inf
        %v647 = vmax.f32 %v639, %v646
        %v648 = vmax.f32 %v641, %v643
        %v649 = vmax.f32 %v645, %v647
        %v650 = vmax.f32 %v648, %v649
        %651 = vst.msk [vmem:[%s239] sm:$0xff] %vm619, %v650
        %s652 = sand.u32 %s153, 1
        %s653 = scalar_lea.sflag [#allocation3], %s652
        %s654 = sand.u32 %s153, 1
        %s655 = smul.addr %s654, 8
        %s656 = scalar_lea.vmem [#allocation2], %s655
        // Predicated region
        $region41: #{tpu_custom_call.1} parent=39 // pred_check
          %p657 = pneg %p163
        $region42: #{tpu_custom_call.1} parent=39 // pred_check_branch
          %659 = sbr.rel (%p657) target = $region44
        $region43: #{tpu_custom_call.1} parent=39 // pred_region
          %s661 = ssub.s32 128, 128
          %662 = vsyncadd %s653, %s661
          %s663 = sadd.s32 %s24, %s23
          %s664 = smul.addr %s663, 128
          %s665 = scalar_lea.hbm %s5, %s664
          %s667 = sshll.u32 %s656, 4
          %s668 = int_to_ptr.vmem [resolvable:$true] %s667
          %670 = dma.vmem_to_hbm [thread:$0]  %s668, 128, %s665, %s653
        $region44: #{tpu_custom_call.1} parent=39 // pred_fallthru
          _
      $region40: #{tpu_custom_call.1} parent=5 // pred_fallthru
        _
      %p671 = scmp.le.s32.totalorder 2, %s14
      // Predicated region
      $region45: #{tpu_custom_call.1} parent=5 // pred_check
        %p672 = pneg %p671
      $region46: #{tpu_custom_call.1} parent=5 // pred_check_branch
        %674 = sbr.rel (%p672) target = $region48
      $region47: #{tpu_custom_call.1} parent=5 // pred_region
        %s675 = ssub.s32 %s14, 2
        // Predicated region
        $region49: #{tpu_custom_call.1} parent=47 // pred_check
          %p676 = pneg %p169
        $region50: #{tpu_custom_call.1} parent=47 // pred_check_branch
          %678 = sbr.rel (%p676) target = $region52
        $region51: #{tpu_custom_call.1} parent=47 // pred_region
          %s679 = sand.u32 %s154, 1
          %s680 = scalar_lea.sflag [#allocation3], %s679
          %s681 = sand.u32 %s154, 1
          %s682 = smul.addr %s681, 8
          %s683 = scalar_lea.vmem [#allocation2], %s682
          %684 = dma.done %s680, 128
        $region52: #{tpu_custom_call.1} parent=47 // pred_fallthru
          _
      $region48: #{tpu_custom_call.1} parent=5 // pred_fallthru
        _
    $region6: #{tpu_custom_call.1} parent=1 // loop_footer
      %s18 = sadd.s32 1, %s14
    $region7: #{tpu_custom_call.1} parent=1 // loop_footer_branch
      %13 = sbr.rel target = $region3
    $region8: #{tpu_custom_call.1} parent=1 // loop_exit
      _
    %685 = vsyncpa [#allocation3], 1
    %s686 = scalar_lea.sflag [#allocation3], 1
    %687 = vsyncpa %s686, 1

</llo_original>
